<compile_context>
chip_gen: v7x
topology: tpu7x:2x2x1
jax: 0.10.0
libtpu: 0.0.40
codegen_flags: <defaults>
</compile_context>

<pallas_src>
import functools
import math

import jax
import jax.numpy as jnp
from jax.experimental import pallas as pl
from jax.experimental.pallas import tpu as pltpu


def _round_up(x, m):
    return ((x + m - 1) // m) * m


def _fused_net_embedding_kernel(x_ref, ig_ref, ib_ref, w_ref, g_ref, b_ref,
                                o_ref, act_ref, *, alpha, eps):
    """Grid step l = one MLP layer. Step 0 additionally applies the input BatchNorm."""
    l = pl.program_id(0)
    last = pl.num_programs(0) - 1

    @pl.when(l == 0)
    def _():
        # Input BatchNorm1d (training-mode stats over the batch axis).
        x = x_ref[...].astype(jnp.float32)
        mean = jnp.mean(x, axis=0, keepdims=True)
        c = x - mean
        var = jnp.mean(c * c, axis=0, keepdims=True)
        y = ig_ref[0] * (c * jax.lax.rsqrt(var + eps)) + ib_ref[0]
        act_ref[...] = y.astype(act_ref.dtype)

    # Layer l: Linear (bias omitted -- it cancels exactly under training-mode BN)
    #          + BatchNorm1d(train) + LeakyReLU(alpha).
    # Operands stay in their storage dtype (bf16 fast path), f32 accumulation.
    h = jnp.dot(act_ref[...], w_ref[0], preferred_element_type=jnp.float32)

    mean = jnp.mean(h, axis=0, keepdims=True)
    c = h - mean
    var = jnp.mean(c * c, axis=0, keepdims=True)
    y = g_ref[0] * (c * jax.lax.rsqrt(var + eps)) + b_ref[0]
    a = jnp.where(y > 0, y, alpha * y)   # LeakyReLU (alpha == 0 -> ReLU)

    act_ref[...] = a.astype(act_ref.dtype)

    @pl.when(l == last)
    def _():
        o_ref[...] = a.astype(o_ref.dtype)


def net_embedding_forward(x, input_bn_params, mlp_params, *, alpha, eps=1e-5):
    """x: (N, input_dim). input_bn_params: (gamma_in[Din], beta_in[Din]).
    mlp_params: list of (W[Din,Dout], gamma[Dout], beta[Dout]) per layer
    (Linear bias intentionally absent: it cancels under training-mode BN)."""
    n, d_in = x.shape
    d_out = mlp_params[0][0].shape[1]
    num_layers = len(mlp_params)
    io_dtype = x.dtype

    # One uniform lane-dense feature width for the whole fused stack.
    dp = _round_up(max(d_in, d_out), 128)

    # Zero-pad input features to dp (padded columns stay exactly zero throughout).
    x_p = jnp.zeros((n, dp), io_dtype).at[:, :d_in].set(x)

    ig_in, ib_in = input_bn_params
    ig = jnp.zeros((1, 1, dp), jnp.float32).at[0, 0, :d_in].set(ig_in)
    ib = jnp.zeros((1, 1, dp), jnp.float32).at[0, 0, :d_in].set(ib_in)

    # Stack + pad per-layer params: W -> (L, dp, dp); gamma/beta -> (L, 1, dp).
    w_stack = jnp.zeros((num_layers, dp, dp), io_dtype)
    g_stack = jnp.ones((num_layers, 1, dp), jnp.float32)
    b_stack = jnp.zeros((num_layers, 1, dp), jnp.float32)   # beta pad MUST be 0
    din_l = d_in
    for l, (w, g, bt) in enumerate(mlp_params):
        w_stack = w_stack.at[l, :din_l, :d_out].set(w.astype(io_dtype))
        g_stack = g_stack.at[l, 0, :d_out].set(g.astype(jnp.float32))
        b_stack = b_stack.at[l, 0, :d_out].set(bt.astype(jnp.float32))
        din_l = d_out

    kernel = functools.partial(_fused_net_embedding_kernel, alpha=float(alpha), eps=eps)

    out_p = pl.pallas_call(
        kernel,
        out_shape=jax.ShapeDtypeStruct((n, dp), io_dtype),
        grid=(num_layers,),
        in_specs=[
            pl.BlockSpec((n, dp), lambda l: (0, 0)),        # x (read only at step 0)
            pl.BlockSpec((1, 1, dp), lambda l: (0, 0, 0)),  # input BN gamma
            pl.BlockSpec((1, 1, dp), lambda l: (0, 0, 0)),  # input BN beta
            pl.BlockSpec((1, dp, dp), lambda l: (l, 0, 0)),  # layer weights (prefetched)
            pl.BlockSpec((1, 1, dp), lambda l: (l, 0, 0)),   # layer BN gamma
            pl.BlockSpec((1, 1, dp), lambda l: (l, 0, 0)),   # layer BN beta
        ],
        out_specs=pl.BlockSpec((n, dp), lambda l: (0, 0)),   # resident across layers
        scratch_shapes=[pltpu.VMEM((n, dp), io_dtype)],      # running activation
        compiler_params=pltpu.CompilerParams(
            dimension_semantics=("arbitrary",),              # layer loop is sequential
            vmem_limit_bytes=32 * 1024 * 1024,               # fits v5e/v6e/v7x budgets
        ),
    )(x_p, ig, ib, w_stack, g_stack, b_stack)

    return out_p[:, :d_out]


# ----------------------------------------------------------------------------
# Parameter init + pure-JAX reference (with the Linear bias, to check cancellation).
# ----------------------------------------------------------------------------
def init_params(key, input_dim, output_dim, num_layers):
    key, kgi, kbi = jax.random.split(key, 3)
    in_gamma = 1.0 + 0.1 * jax.random.normal(kgi, (input_dim,), jnp.float32)
    in_beta = 0.1 * jax.random.normal(kbi, (input_dim,), jnp.float32)

    mlp, mlp_with_bias = [], []
    d_in = input_dim
    for _ in range(num_layers):
        key, kw, kb, kg, kbt = jax.random.split(key, 5)
        bound = 1.0 / math.sqrt(d_in)
        w = jax.random.uniform(kw, (d_in, output_dim), jnp.float32, -bound, bound)
        b = jax.random.uniform(kb, (output_dim,), jnp.float32, -bound, bound)
        g = 1.0 + 0.1 * jax.random.normal(kg, (output_dim,), jnp.float32)
        bt = 0.1 * jax.random.normal(kbt, (output_dim,), jnp.float32)
        mlp.append((w, g, bt))                 # kernel params (bias cancels -> omitted)
        mlp_with_bias.append((w, b, g, bt))    # reference params (bias included)
        d_in = output_dim
    return (in_gamma, in_beta), mlp, mlp_with_bias


def reference_forward(x, input_bn_params, mlp_with_bias, *, alpha, eps=1e-5):
    def bn(h, g, b):
        m = jnp.mean(h, axis=0, keepdims=True)
        v = jnp.mean((h - m) ** 2, axis=0, keepdims=True)
        return g * (h - m) / jnp.sqrt(v + eps) + b

    ig, ib = input_bn_params
    h = bn(x.astype(jnp.float32), ig, ib)
    for (w, b, g, bt) in mlp_with_bias:
        z = h @ w + b                       # bias present here; cancels under BN
        y = bn(z, g, bt)
        h = jnp.where(y > 0, y, alpha * y)
    return h


if __name__ == "__main__":
    batch, input_dim, output_dim, num_layers = 8, 16, 32, 3
    alpha = 0.1  # LeakyReLU negative slope

    key = jax.random.PRNGKey(0)
    key, kx = jax.random.split(key)
    x = jax.random.normal(kx, (batch, input_dim), jnp.float32)

    input_bn_params, mlp_params, mlp_with_bias = init_params(
        key, input_dim, output_dim, num_layers)

    out = net_embedding_forward(x, input_bn_params, mlp_params, alpha=alpha)
    jax.block_until_ready(out)

    ref = reference_forward(x, input_bn_params, mlp_with_bias, alpha=alpha)

    assert out.shape == (batch, output_dim)
    assert jnp.all(jnp.isfinite(out))
    assert jnp.allclose(out, ref, rtol=5e-3, atol=5e-3), (
        float(jnp.max(jnp.abs(out - ref))))
    print("KERNEL_OK")
</pallas_src>

<mosaic_0001>
module attributes {stable_mosaic.version = 11 : i64} {
  func.func @_fused_net_embedding_kernel(%arg0: i32, %arg1: memref<8x128xf32, #tpu.memory_space<vmem>>, %arg2: memref<1x1x128xf32, #tpu.memory_space<vmem>>, %arg3: memref<1x1x128xf32, #tpu.memory_space<vmem>>, %arg4: memref<1x128x128xf32, #tpu.memory_space<vmem>>, %arg5: memref<1x1x128xf32, #tpu.memory_space<vmem>>, %arg6: memref<1x1x128xf32, #tpu.memory_space<vmem>>, %arg7: memref<8x128xf32, #tpu.memory_space<vmem>>, %arg8: memref<8x128xf32, #tpu.memory_space<vmem>>) attributes {dimension_semantics = [#tpu.dimension_semantics<arbitrary>], iteration_bounds = array<i64: 3>, scalar_prefetch = 0 : i64, scratch_operands = 1 : i64, tpu.core_type = #tpu.core_type<tc>, window_params = [{pipeline_mode = #tpu.pipeline_mode<synchronous>, transform_indices = @transform_0, window_bounds = array<i64: 8, 128>}, {pipeline_mode = #tpu.pipeline_mode<synchronous>, transform_indices = @transform_1, window_bounds = array<i64: 1, 1, 128>}, {pipeline_mode = #tpu.pipeline_mode<synchronous>, transform_indices = @transform_2, window_bounds = array<i64: 1, 1, 128>}, {transform_indices = @transform_3, window_bounds = array<i64: 1, 128, 128>}, {transform_indices = @transform_4, window_bounds = array<i64: 1, 1, 128>}, {transform_indices = @transform_5, window_bounds = array<i64: 1, 1, 128>}, {pipeline_mode = #tpu.pipeline_mode<synchronous>, transform_indices = @transform_6, window_bounds = array<i64: 8, 128>}]} {
    %c0_i32 = arith.constant 0 : i32
    %0 = arith.cmpi eq, %arg0, %c0_i32 : i32
    %1 = arith.extui %0 : i1 to i32
    %c0_i32_0 = arith.constant 0 : i32
    %2 = arith.cmpi ne, %1, %c0_i32_0 : i32
    scf.if %2 {
      %c0_21 = arith.constant 0 : index
      %c0_22 = arith.constant 0 : index
      %40 = vector.load %arg1[%c0_21, %c0_22] : memref<8x128xf32, #tpu.memory_space<vmem>>, vector<8x128xf32>
      %cst_23 = arith.constant dense<0.000000e+00> : vector<128xf32>
      %41 = vector.multi_reduction <add>, %40, %cst_23 [0] : vector<8x128xf32> to vector<128xf32>
      %42 = vector.shape_cast %41 : vector<128xf32> to vector<1x128xf32>
      %cst_24 = arith.constant 8.000000e+00 : f32
      %43 = vector.broadcast %cst_24 : f32 to vector<1x128xf32>
      %44 = arith.divf %42, %43 : vector<1x128xf32>
      %45 = vector.broadcast %44 : vector<1x128xf32> to vector<8x128xf32>
      %46 = arith.subf %40, %45 : vector<8x128xf32>
      %47 = arith.mulf %46, %46 : vector<8x128xf32>
      %cst_25 = arith.constant dense<0.000000e+00> : vector<128xf32>
      %48 = vector.multi_reduction <add>, %47, %cst_25 [0] : vector<8x128xf32> to vector<128xf32>
      %49 = vector.shape_cast %48 : vector<128xf32> to vector<1x128xf32>
      %cst_26 = arith.constant 8.000000e+00 : f32
      %50 = vector.broadcast %cst_26 : f32 to vector<1x128xf32>
      %51 = arith.divf %49, %50 : vector<1x128xf32>
      %c0_27 = arith.constant 0 : index
      %c0_28 = arith.constant 0 : index
      %c0_29 = arith.constant 0 : index
      %52 = vector.load %arg2[%c0_27, %c0_28, %c0_29] : memref<1x1x128xf32, #tpu.memory_space<vmem>>, vector<1x1x128xf32>
      %53 = vector.shape_cast %52 : vector<1x1x128xf32> to vector<1x128xf32>
      %cst_30 = arith.constant 9.99999974E-6 : f32
      %54 = vector.broadcast %cst_30 : f32 to vector<1x128xf32>
      %55 = arith.addf %51, %54 : vector<1x128xf32>
      %56 = math.rsqrt %55 : vector<1x128xf32>
      %57 = vector.broadcast %56 : vector<1x128xf32> to vector<8x128xf32>
      %58 = arith.mulf %46, %57 : vector<8x128xf32>
      %59 = vector.broadcast %53 : vector<1x128xf32> to vector<8x128xf32>
      %60 = arith.mulf %59, %58 : vector<8x128xf32>
      %c0_31 = arith.constant 0 : index
      %c0_32 = arith.constant 0 : index
      %c0_33 = arith.constant 0 : index
      %61 = vector.load %arg3[%c0_31, %c0_32, %c0_33] : memref<1x1x128xf32, #tpu.memory_space<vmem>>, vector<1x1x128xf32>
      %62 = vector.shape_cast %61 : vector<1x1x128xf32> to vector<1x128xf32>
      %63 = vector.broadcast %62 : vector<1x128xf32> to vector<8x128xf32>
      %64 = arith.addf %60, %63 : vector<8x128xf32>
      %c0_34 = arith.constant 0 : index
      %c0_35 = arith.constant 0 : index
      %65 = vector.load %arg8[%c0_34, %c0_35] : memref<8x128xf32, #tpu.memory_space<vmem>>, vector<8x128xf32>
      tpu.vector_store %arg8[%c0_34, %c0_35], %64 {strides = array<i32>} : memref<8x128xf32, #tpu.memory_space<vmem>>, vector<8x128xf32>,
    } else {
    }
    %c0 = arith.constant 0 : index
    %c0_1 = arith.constant 0 : index
    %3 = vector.load %arg8[%c0, %c0_1] : memref<8x128xf32, #tpu.memory_space<vmem>>, vector<8x128xf32>
    %c0_2 = arith.constant 0 : index
    %c0_3 = arith.constant 0 : index
    %c0_4 = arith.constant 0 : index
    %4 = vector.load %arg4[%c0_2, %c0_3, %c0_4] : memref<1x128x128xf32, #tpu.memory_space<vmem>>, vector<1x128x128xf32>
    %5 = vector.shape_cast %4 : vector<1x128x128xf32> to vector<128x128xf32>
    %cst = arith.constant dense<0.000000e+00> : vector<8x128xf32>
    %6 = tpu.matmul %3, %5, %cst {dimension_numbers = #tpu.dot_dimension_numbers<[1], [0], [0], [1], [0, 0, 1, 1], [], []>} : vector<8x128xf32>, vector<128x128xf32>, vector<8x128xf32> -> vector<8x128xf32>
    %cst_5 = arith.constant dense<0.000000e+00> : vector<128xf32>
    %7 = vector.multi_reduction <add>, %6, %cst_5 [0] : vector<8x128xf32> to vector<128xf32>
    %8 = vector.shape_cast %7 : vector<128xf32> to vector<1x128xf32>
    %cst_6 = arith.constant 8.000000e+00 : f32
    %9 = vector.broadcast %cst_6 : f32 to vector<1x128xf32>
    %10 = arith.divf %8, %9 : vector<1x128xf32>
    %11 = vector.broadcast %10 : vector<1x128xf32> to vector<8x128xf32>
    %12 = arith.subf %6, %11 : vector<8x128xf32>
    %13 = arith.mulf %12, %12 : vector<8x128xf32>
    %cst_7 = arith.constant dense<0.000000e+00> : vector<128xf32>
    %14 = vector.multi_reduction <add>, %13, %cst_7 [0] : vector<8x128xf32> to vector<128xf32>
    %15 = vector.shape_cast %14 : vector<128xf32> to vector<1x128xf32>
    %cst_8 = arith.constant 8.000000e+00 : f32
    %16 = vector.broadcast %cst_8 : f32 to vector<1x128xf32>
    %17 = arith.divf %15, %16 : vector<1x128xf32>
    %c0_9 = arith.constant 0 : index
    %c0_10 = arith.constant 0 : index
    %c0_11 = arith.constant 0 : index
    %18 = vector.load %arg5[%c0_9, %c0_10, %c0_11] : memref<1x1x128xf32, #tpu.memory_space<vmem>>, vector<1x1x128xf32>
    %19 = vector.shape_cast %18 : vector<1x1x128xf32> to vector<1x128xf32>
    %cst_12 = arith.constant 9.99999974E-6 : f32
    %20 = vector.broadcast %cst_12 : f32 to vector<1x128xf32>
    %21 = arith.addf %17, %20 : vector<1x128xf32>
    %22 = math.rsqrt %21 : vector<1x128xf32>
    %23 = vector.broadcast %22 : vector<1x128xf32> to vector<8x128xf32>
    %24 = arith.mulf %12, %23 : vector<8x128xf32>
    %25 = vector.broadcast %19 : vector<1x128xf32> to vector<8x128xf32>
    %26 = arith.mulf %25, %24 : vector<8x128xf32>
    %c0_13 = arith.constant 0 : index
    %c0_14 = arith.constant 0 : index
    %c0_15 = arith.constant 0 : index
    %27 = vector.load %arg6[%c0_13, %c0_14, %c0_15] : memref<1x1x128xf32, #tpu.memory_space<vmem>>, vector<1x1x128xf32>
    %28 = vector.shape_cast %27 : vector<1x1x128xf32> to vector<1x128xf32>
    %29 = vector.broadcast %28 : vector<1x128xf32> to vector<8x128xf32>
    %30 = arith.addf %26, %29 : vector<8x128xf32>
    %cst_16 = arith.constant 0.000000e+00 : f32
    %31 = vector.broadcast %cst_16 : f32 to vector<8x128xf32>
    %32 = arith.cmpf ogt, %30, %31 : vector<8x128xf32>
    %cst_17 = arith.constant 1.000000e-01 : f32
    %33 = vector.broadcast %cst_17 : f32 to vector<8x128xf32>
    %34 = arith.mulf %33, %30 : vector<8x128xf32>
    %35 = arith.select %32, %30, %34 : vector<8x128xi1>, vector<8x128xf32>
    %c0_18 = arith.constant 0 : index
    %c0_19 = arith.constant 0 : index
    %36 = vector.load %arg8[%c0_18, %c0_19] : memref<8x128xf32, #tpu.memory_space<vmem>>, vector<8x128xf32>
    tpu.vector_store %arg8[%c0_18, %c0_19], %35 {strides = array<i32>} : memref<8x128xf32, #tpu.memory_space<vmem>>, vector<8x128xf32>,
    %c2_i32 = arith.constant 2 : i32
    %37 = arith.cmpi eq, %arg0, %c2_i32 : i32
    %38 = arith.extui %37 : i1 to i32
    %c0_i32_20 = arith.constant 0 : i32
    %39 = arith.cmpi ne, %38, %c0_i32_20 : i32
    scf.if %39 {
      %c0_21 = arith.constant 0 : index
      %c0_22 = arith.constant 0 : index
      %40 = vector.load %arg7[%c0_21, %c0_22] : memref<8x128xf32, #tpu.memory_space<vmem>>, vector<8x128xf32>
      tpu.vector_store %arg7[%c0_21, %c0_22], %35 {strides = array<i32>} : memref<8x128xf32, #tpu.memory_space<vmem>>, vector<8x128xf32>,
    } else {
    }
    return
  }
  func.func @transform_0(%arg0: i32) -> (i32, i32) {
    %c0_i32 = arith.constant 0 : i32
    %c0_i32_0 = arith.constant 0 : i32
    %c0_i32_1 = arith.constant 0 : i32
    return %c0_i32, %c0_i32_0 : i32, i32
  }
  func.func @transform_1(%arg0: i32) -> (i32, i32, i32) {
    %c0_i32 = arith.constant 0 : i32
    %c0_i32_0 = arith.constant 0 : i32
    %c0_i32_1 = arith.constant 0 : i32
    %c0_i32_2 = arith.constant 0 : i32
    return %c0_i32, %c0_i32_0, %c0_i32_1 : i32, i32, i32
  }
  func.func @transform_2(%arg0: i32) -> (i32, i32, i32) {
    %c0_i32 = arith.constant 0 : i32
    %c0_i32_0 = arith.constant 0 : i32
    %c0_i32_1 = arith.constant 0 : i32
    %c0_i32_2 = arith.constant 0 : i32
    return %c0_i32, %c0_i32_0, %c0_i32_1 : i32, i32, i32
  }
  func.func @transform_3(%arg0: i32) -> (i32, i32, i32) {
    %c0_i32 = arith.constant 0 : i32
    %c0_i32_0 = arith.constant 0 : i32
    %c0_i32_1 = arith.constant 0 : i32
    return %arg0, %c0_i32, %c0_i32_0 : i32, i32, i32
  }
  func.func @transform_4(%arg0: i32) -> (i32, i32, i32) {
    %c0_i32 = arith.constant 0 : i32
    %c0_i32_0 = arith.constant 0 : i32
    %c0_i32_1 = arith.constant 0 : i32
    return %arg0, %c0_i32, %c0_i32_0 : i32, i32, i32
  }
  func.func @transform_5(%arg0: i32) -> (i32, i32, i32) {
    %c0_i32 = arith.constant 0 : i32
    %c0_i32_0 = arith.constant 0 : i32
    %c0_i32_1 = arith.constant 0 : i32
    return %arg0, %c0_i32, %c0_i32_0 : i32, i32, i32
  }
  func.func @transform_6(%arg0: i32) -> (i32, i32) {
    %c0_i32 = arith.constant 0 : i32
    %c0_i32_0 = arith.constant 0 : i32
    %c0_i32_1 = arith.constant 0 : i32
    return %c0_i32, %c0_i32_0 : i32, i32
  }
}

</mosaic_0001>

<llo_original>
// kernel: tpu_custom_call.1
$region0: #{tpu_custom_call.1}
  #allocation0 [shape = 'u32[]', space=smem, size = 0x4, offset = 0x4, fixed_abs, tag = 'smem constant byte address 0x4 - core index']
  #allocation1 [shape = 'u32[144,128]{1,0:T(1,128)}', space=vmem, size = 0x12000, scoped, tag = 'internal scratch']
  #allocation2 [shape = 'f32[8,128]{1,0:T(8,128)}', space=vmem, size = 0x1000, scoped, tag = 'scratch operand']
  %s0 = inlined_call_operand.hbm [shape: f32[8,128], index: 0, kind: input, shape index: {}]
  %s1 = inlined_call_operand.vmem [shape: f32[1,1,128], index: 1, kind: input, shape index: {}]
  %s2 = inlined_call_operand.hbm [shape: f32[1,1,128], index: 2, kind: input, shape index: {}]
  %s3 = inlined_call_operand.hbm [shape: f32[3,128,128], index: 3, kind: input, shape index: {}]
  %s4 = inlined_call_operand.vmem [shape: f32[3,1,128], index: 4, kind: input, shape index: {}]
  %s5 = inlined_call_operand.vmem [shape: f32[3,1,128], index: 5, kind: input, shape index: {}]
  %s6 = inlined_call_operand.hbm [shape: f32[8,128], index: 6, kind: output, shape index: {}]
  %s7 = sld [smem:[#allocation0]]
  $region77: #{tpu_custom_call.1} parent=0
    _
  %s9 = ssub.s32 1, %s7
  %s10 = scalar_select 0, %s9, %s7
  $region1: #{tpu_custom_call.1} parent=0
    #allocation3 [shape = 'u8[4096]{0}', space=vmem, size = 0x1000, scoped, tag = 'input window, operand 0, single buffered']
    #allocation4 [shape = 's32[2]{0}', space=sflag, size = 0x8, scoped, tag = 'scoped memory for tpu_custom_call.1']
    #allocation5 [shape = 's32[2]{0}', space=sflag, size = 0x8, scoped, tag = 'scoped memory for tpu_custom_call.1']
    #allocation6 [shape = 'u8[512]{0}', space=vmem, size = 0x400, scoped, tag = 'input window, operand 2, single buffered']
    #allocation7 [shape = 's32[1]{0}', space=sflag, size = 0x4, scoped, tag = 'scoped memory for tpu_custom_call.1']
    #allocation8 [shape = 'u8[131072]{0}', space=vmem, size = 0x20000, scoped, tag = 'input window, operand 3']
    #allocation9 [shape = 'u8[4096]{0}', space=vmem, size = 0x1000, scoped, tag = 'output window, operand 0, single buffered']
    %11 = vsyncpa [#allocation4], 0
    %12 = vsyncpa [#allocation7], 0
    %13 = vsyncpa [#allocation5], 0
    loop: start=0, step=1, limit=5
    $region2: #{tpu_custom_call.1} parent=1 // loop_pre_header
      _
    $region3: #{tpu_custom_call.1} parent=1 // loop_header
      %s15 = sphi 0, %s19
      %p16 = scmp.ge.s32.totalorder %s15, 5
      %s23 = sphi 0, %s23
      %s25 = sphi 0, %s23
      %s26 = sphi 0, %s25
      %s40 = sphi 0, %s26
      %s44 = sphi 0, %s44
      %s46 = sphi 0, %s44
      %s47 = sphi 0, %s46
      %s61 = sphi 0, %s47
      %s65 = sphi 0, %s65
      %s67 = sphi 0, %s65
      %s68 = sphi 0, %s67
      %s82 = sphi 0, %s68
      %s88 = sphi 0, %s90
      %s91 = sphi 0, %s88
      %s92 = sphi 0, %s91
      %s108 = sphi 0, %s92
      %s114 = sphi 0, %s116
      %s117 = sphi 0, %s114
      %s118 = sphi 0, %s117
      %s134 = sphi 0, %s118
      %s140 = sphi 0, %s142
      %s143 = sphi 0, %s140
      %s144 = sphi 0, %s143
      %s160 = sphi 0, %s144
      %s164 = sphi 0, %s164
      %s166 = sphi 0, %s164
      %s167 = sphi 0, %s166
      %s181 = sphi 0, %s167
    $region4: #{tpu_custom_call.1} parent=1 // loop_header_branch
      %18 = sbr.rel (%p16) target = $region8
    $region5: #{tpu_custom_call.1} parent=1 // loop_body
      %s20 = ssub.s32 %s15, 1
      %s21 = ssub.s32 %s15, 2
      %s22 = sadd.s32 %s15, 1
      %s24 = sadd.s32 %s23, 1
      %p27 = scmp.eq.s32.totalorder %s15, 2
      %p28 = scmp.ne.s32.totalorder %s23, %s25
      %p29 = scmp.eq.s32.totalorder %s15, 0
      %p30 = por %p28, %p29
      %p31 = scmp.ne.s32.totalorder %s23, %s25
      %p32 = scmp.eq.s32.totalorder %s20, 2
      %p33 = por %p31, %p32
      %p34 = scmp.ne.s32.totalorder %s25, %s26
      %p35 = scmp.eq.s32.totalorder %s20, 0
      %p36 = por %p34, %p35
      %p37 = scmp.ne.s32.totalorder %s25, %s26
      %p38 = scmp.eq.s32.totalorder %s21, 2
      %p39 = por %p37, %p38
      %p41 = scmp.ne.s32.totalorder %s26, %s40
      %p42 = scmp.eq.s32.totalorder %s21, 0
      %p43 = por %p41, %p42
      %s45 = sadd.s32 %s44, 1
      %p48 = scmp.eq.s32.totalorder %s15, 2
      %p49 = scmp.ne.s32.totalorder %s44, %s46
      %p50 = scmp.eq.s32.totalorder %s15, 0
      %p51 = por %p49, %p50
      %p52 = scmp.ne.s32.totalorder %s44, %s46
      %p53 = scmp.eq.s32.totalorder %s20, 2
      %p54 = por %p52, %p53
      %p55 = scmp.ne.s32.totalorder %s46, %s47
      %p56 = scmp.eq.s32.totalorder %s20, 0
      %p57 = por %p55, %p56
      %p58 = scmp.ne.s32.totalorder %s46, %s47
      %p59 = scmp.eq.s32.totalorder %s21, 2
      %p60 = por %p58, %p59
      %p62 = scmp.ne.s32.totalorder %s47, %s61
      %p63 = scmp.eq.s32.totalorder %s21, 0
      %p64 = por %p62, %p63
      %s66 = sadd.s32 %s65, 1
      %p69 = scmp.eq.s32.totalorder %s15, 2
      %p70 = scmp.ne.s32.totalorder %s65, %s67
      %p71 = scmp.eq.s32.totalorder %s15, 0
      %p72 = por %p70, %p71
      %p73 = scmp.ne.s32.totalorder %s65, %s67
      %p74 = scmp.eq.s32.totalorder %s20, 2
      %p75 = por %p73, %p74
      %p76 = scmp.ne.s32.totalorder %s67, %s68
      %p77 = scmp.eq.s32.totalorder %s20, 0
      %p78 = por %p76, %p77
      %p79 = scmp.ne.s32.totalorder %s67, %s68
      %p80 = scmp.eq.s32.totalorder %s21, 2
      %p81 = por %p79, %p80
      %p83 = scmp.ne.s32.totalorder %s68, %s82
      %p84 = scmp.eq.s32.totalorder %s21, 0
      %p85 = por %p83, %p84
      %s86 = ssub.s32 %s15, %s22
      %p87 = scmp.eq.s32.totalorder %s86, 0
      %s89 = sadd.s32 %s88, 1
      %s90 = scalar_select %p87, %s88, %s89
      %p93 = pneg %p87
      %p94 = scmp.eq.s32.totalorder %s15, 2
      %p95 = por %p93, %p94
      %p96 = scmp.ne.s32.totalorder %s88, %s91
      %p97 = scmp.eq.s32.totalorder %s15, 0
      %p98 = por %p96, %p97
      %p99 = scmp.ne.s32.totalorder %s88, %s91
      %p100 = scmp.eq.s32.totalorder %s20, 2
      %p101 = por %p99, %p100
      %p102 = scmp.ne.s32.totalorder %s91, %s92
      %p103 = scmp.eq.s32.totalorder %s20, 0
      %p104 = por %p102, %p103
      %p105 = scmp.ne.s32.totalorder %s91, %s92
      %p106 = scmp.eq.s32.totalorder %s21, 2
      %p107 = por %p105, %p106
      %p109 = scmp.ne.s32.totalorder %s92, %s108
      %p110 = scmp.eq.s32.totalorder %s21, 0
      %p111 = por %p109, %p110
      %s112 = ssub.s32 %s15, %s22
      %p113 = scmp.eq.s32.totalorder %s112, 0
      %s115 = sadd.s32 %s114, 1
      %s116 = scalar_select %p113, %s114, %s115
      %p119 = pneg %p113
      %p120 = scmp.eq.s32.totalorder %s15, 2
      %p121 = por %p119, %p120
      %p122 = scmp.ne.s32.totalorder %s114, %s117
      %p123 = scmp.eq.s32.totalorder %s15, 0
      %p124 = por %p122, %p123
      %p125 = scmp.ne.s32.totalorder %s114, %s117
      %p126 = scmp.eq.s32.totalorder %s20, 2
      %p127 = por %p125, %p126
      %p128 = scmp.ne.s32.totalorder %s117, %s118
      %p129 = scmp.eq.s32.totalorder %s20, 0
      %p130 = por %p128, %p129
      %p131 = scmp.ne.s32.totalorder %s117, %s118
      %p132 = scmp.eq.s32.totalorder %s21, 2
      %p133 = por %p131, %p132
      %p135 = scmp.ne.s32.totalorder %s118, %s134
      %p136 = scmp.eq.s32.totalorder %s21, 0
      %p137 = por %p135, %p136
      %s138 = ssub.s32 %s15, %s22
      %p139 = scmp.eq.s32.totalorder %s138, 0
      %s141 = sadd.s32 %s140, 1
      %s142 = scalar_select %p139, %s140, %s141
      %p145 = pneg %p139
      %p146 = scmp.eq.s32.totalorder %s15, 2
      %p147 = por %p145, %p146
      %p148 = scmp.ne.s32.totalorder %s140, %s143
      %p149 = scmp.eq.s32.totalorder %s15, 0
      %p150 = por %p148, %p149
      %p151 = scmp.ne.s32.totalorder %s140, %s143
      %p152 = scmp.eq.s32.totalorder %s20, 2
      %p153 = por %p151, %p152
      %p154 = scmp.ne.s32.totalorder %s143, %s144
      %p155 = scmp.eq.s32.totalorder %s20, 0
      %p156 = por %p154, %p155
      %p157 = scmp.ne.s32.totalorder %s143, %s144
      %p158 = scmp.eq.s32.totalorder %s21, 2
      %p159 = por %p157, %p158
      %p161 = scmp.ne.s32.totalorder %s144, %s160
      %p162 = scmp.eq.s32.totalorder %s21, 0
      %p163 = por %p161, %p162
      %s165 = sadd.s32 %s164, 1
      %p168 = scmp.eq.s32.totalorder %s15, 2
      %p169 = scmp.ne.s32.totalorder %s164, %s166
      %p170 = scmp.eq.s32.totalorder %s15, 0
      %p171 = por %p169, %p170
      %p172 = scmp.ne.s32.totalorder %s164, %s166
      %p173 = scmp.eq.s32.totalorder %s20, 2
      %p174 = por %p172, %p173
      %p175 = scmp.ne.s32.totalorder %s166, %s167
      %p176 = scmp.eq.s32.totalorder %s20, 0
      %p177 = por %p175, %p176
      %p178 = scmp.ne.s32.totalorder %s166, %s167
      %p179 = scmp.eq.s32.totalorder %s21, 2
      %p180 = por %p178, %p179
      %p182 = scmp.ne.s32.totalorder %s167, %s181
      %p183 = scmp.eq.s32.totalorder %s21, 0
      %p184 = por %p182, %p183
      %p185 = scmp.le.s32.totalorder 1, %s15
      %p186 = scmp.lt.s32.totalorder %s15, 4
      %p187 = pnand %p185, %p186
      %p188 = pneg %p187
      // Predicated region
      $region9: #{tpu_custom_call.1} parent=5 // pred_check
        _
      $region10: #{tpu_custom_call.1} parent=5 // pred_check_branch
        %190 = sbr.rel (%p187) target = $region12
      $region11: #{tpu_custom_call.1} parent=5 // pred_region
        %s191 = ssub.s32 %s15, 1
        // Predicated region
        $region13: #{tpu_custom_call.1} parent=11 // pred_check
          %p192 = pneg %p36
        $region14: #{tpu_custom_call.1} parent=11 // pred_check_branch
          %194 = sbr.rel (%p192) target = $region16
        $region15: #{tpu_custom_call.1} parent=11 // pred_region
          %s196 = ssub.s32 128, 128
          %197 = vsyncadd [#allocation4], %s196
          %s199 = sshll.u32 [#allocation3], 4
          %s200 = int_to_ptr.vmem [resolvable:$true] %s199
          %202 = dma.hbm_to_vmem [thread:$0]  %s0, 128, %s200, [#allocation4]
        $region16: #{tpu_custom_call.1} parent=11 // pred_fallthru
          _
        // Predicated region
        $region17: #{tpu_custom_call.1} parent=11 // pred_check
          %p203 = pneg %p57
        $region18: #{tpu_custom_call.1} parent=11 // pred_check_branch
          %205 = sbr.rel (%p203) target = $region20
        $region19: #{tpu_custom_call.1} parent=11 // pred_region
          _
        $region20: #{tpu_custom_call.1} parent=11 // pred_fallthru
          _
        // Predicated region
        $region21: #{tpu_custom_call.1} parent=11 // pred_check
          %p206 = pneg %p78
        $region22: #{tpu_custom_call.1} parent=11 // pred_check_branch
          %208 = sbr.rel (%p206) target = $region24
        $region23: #{tpu_custom_call.1} parent=11 // pred_region
          %s210 = ssub.s32 16, 16
          %211 = vsyncadd [#allocation7], %s210
          %s213 = sshll.u32 [#allocation6], 4
          %s214 = int_to_ptr.vmem [resolvable:$true] %s213
          %216 = dma.hbm_to_vmem [thread:$0]  %s2, 16, %s214, [#allocation7]
        $region24: #{tpu_custom_call.1} parent=11 // pred_fallthru
          _
      $region12: #{tpu_custom_call.1} parent=5 // pred_fallthru
        _
      %p217 = scmp.lt.s32.totalorder %s15, 3
      // Predicated region
      $region25: #{tpu_custom_call.1} parent=5 // pred_check
        %p218 = pneg %p217
      $region26: #{tpu_custom_call.1} parent=5 // pred_check_branch
        %220 = sbr.rel (%p218) target = $region28
      $region27: #{tpu_custom_call.1} parent=5 // pred_region
        // Predicated region
        $region29: #{tpu_custom_call.1} parent=27 // pred_check
          %p221 = pneg %p98
        $region30: #{tpu_custom_call.1} parent=27 // pred_check_branch
          %223 = sbr.rel (%p221) target = $region32
        $region31: #{tpu_custom_call.1} parent=27 // pred_region
          %s224 = sand.u32 %s15, 1
          %s225 = scalar_lea.sflag [#allocation4], %s224
          %s226 = sand.u32 %s88, 1
          %s227 = smul.addr %s226, 128
          %s228 = scalar_lea.vmem [#allocation8], %s227
          %s230 = ssub.s32 2048, 2048
          %231 = vsyncadd %s225, %s230
          %s232 = smul.addr %s15, 16
          %s233 = smul.addr %s232, 128
          %s234 = scalar_lea.hbm %s3, %s233
          %s235 = sshll.u32 %s228, 4
          %s236 = int_to_ptr.vmem [resolvable:$true] %s235
          %241 = dma.hbm_to_vmem [thread:$0]  %s234, 2048, %s236, %s225, 128, 128, 8
        $region32: #{tpu_custom_call.1} parent=27 // pred_fallthru
          _
        // Predicated region
        $region33: #{tpu_custom_call.1} parent=27 // pred_check
          %p242 = pneg %p124
        $region34: #{tpu_custom_call.1} parent=27 // pred_check_branch
          %244 = sbr.rel (%p242) target = $region36
        $region35: #{tpu_custom_call.1} parent=27 // pred_region
          %p245 = scmp.lt.s32.totalorder %s15, 2
          %s246 = scalar_select %p245, %s15, 2
          %s247 = scalar_lea.vmem %s4, %s246
        $region36: #{tpu_custom_call.1} parent=27 // pred_fallthru
          _
        // Predicated region
        $region37: #{tpu_custom_call.1} parent=27 // pred_check
          %p248 = pneg %p150
        $region38: #{tpu_custom_call.1} parent=27 // pred_check_branch
          %250 = sbr.rel (%p248) target = $region40
        $region39: #{tpu_custom_call.1} parent=27 // pred_region
          %p251 = scmp.lt.s32.totalorder %s15, 2
          %s252 = scalar_select %p251, %s15, 2
          %s253 = scalar_lea.vmem %s5, %s252
        $region40: #{tpu_custom_call.1} parent=27 // pred_fallthru
          _
      $region28: #{tpu_custom_call.1} parent=5 // pred_fallthru
        _
      %p254 = scmp.le.s32.totalorder 1, %s15
      %p255 = scmp.lt.s32.totalorder %s15, 4
      %p256 = pnand %p254, %p255
      %p257 = pneg %p256
      // Predicated region
      $region41: #{tpu_custom_call.1} parent=5 // pred_check
        _
      $region42: #{tpu_custom_call.1} parent=5 // pred_check_branch
        %259 = sbr.rel (%p256) target = $region44
      $region43: #{tpu_custom_call.1} parent=5 // pred_region
        %s260 = ssub.s32 %s15, 1
        // Predicated region
        $region45: #{tpu_custom_call.1} parent=43 // pred_check
          %p261 = pneg %p36
        $region46: #{tpu_custom_call.1} parent=43 // pred_check_branch
          %263 = sbr.rel (%p261) target = $region48
        $region47: #{tpu_custom_call.1} parent=43 // pred_region
          %264 = dma.done [#allocation4], 128
        $region48: #{tpu_custom_call.1} parent=43 // pred_fallthru
          _
        // Predicated region
        $region49: #{tpu_custom_call.1} parent=43 // pred_check
          %p265 = pneg %p78
        $region50: #{tpu_custom_call.1} parent=43 // pred_check_branch
          %267 = sbr.rel (%p265) target = $region52
        $region51: #{tpu_custom_call.1} parent=43 // pred_region
          %268 = dma.done [#allocation7], 16
        $region52: #{tpu_custom_call.1} parent=43 // pred_fallthru
          _
        %s269 = sand.u32 %s20, 1
        %s270 = scalar_lea.sflag [#allocation4], %s269
        %s271 = sand.u32 %s91, 1
        %s272 = smul.addr %s271, 128
        %s273 = scalar_lea.vmem [#allocation8], %s272
        // Predicated region
        $region53: #{tpu_custom_call.1} parent=43 // pred_check
          %p274 = pneg %p104
        $region54: #{tpu_custom_call.1} parent=43 // pred_check_branch
          %276 = sbr.rel (%p274) target = $region56
        $region55: #{tpu_custom_call.1} parent=43 // pred_region
          %277 = dma.done %s270, 2048
        $region56: #{tpu_custom_call.1} parent=43 // pred_fallthru
          _
        %p278 = pneg %p36
        %p279 = pneg %p33
        %p280 = pneg %p57
        %p281 = pneg %p54
        %p282 = pneg %p78
        %p283 = pneg %p75
        %s284 = sand.u32 %s20, 1
        %s285 = scalar_lea.sflag [#allocation4], %s284
        %s286 = sand.u32 %s91, 1
        %s287 = smul.addr %s286, 128
        %s288 = scalar_lea.vmem [#allocation8], %s287
        %p289 = pneg %p104
        %p290 = pneg %p101
        %p291 = scmp.lt.s32.totalorder %s20, 2
        %s292 = scalar_select %p291, %s20, 2
        %s293 = scalar_lea.vmem %s4, %s292
        %p294 = pneg %p130
        %p295 = pneg %p127
        %p296 = scmp.lt.s32.totalorder %s20, 2
        %s297 = scalar_select %p296, %s20, 2
        %s298 = scalar_lea.vmem %s5, %s297
        %p299 = pneg %p156
        %p300 = pneg %p153
        %p301 = pneg %p177
        %p302 = pneg %p174
        %p303 = scmp.lt.s32.totalorder %s20, 2
        %s304 = scalar_select %p303, %s20, 2
        %s305 = scalar_lea.vmem %s4, %s304
        %p306 = scmp.lt.s32.totalorder %s20, 2
        %s307 = scalar_select %p306, %s20, 2
        %s308 = scalar_lea.vmem %s5, %s307
        %p309 = scmp.eq.s32.totalorder %s20, 0
        // Predicated region
        $region57: #{tpu_custom_call.1} parent=43 // pred_check
          %p310 = pneg %p309
        $region58: #{tpu_custom_call.1} parent=43 // pred_check_branch
          %312 = sbr.rel (%p310) target = $region60
        $region59: #{tpu_custom_call.1} parent=43 // pred_region
          %v313 = vld [vmem:[#allocation3] sm:$0xff]
          %v314 = vrot.slane %v313, 4
          %v315 = vadd.f32 %v313, %v314
          %v316 = vrot.slane %v315, 2
          %v317 = vadd.f32 %v315, %v316
          %v318 = vrot.slane %v317, 1
          %v319 = vadd.f32 %v317, %v318
          %v320 = vrcp.pop 8.0
          %v321 = vmul.f32 %v319, %v320
          %v322 = vsub.f32 %v313, %v321
          %v323 = vmul.f32 %v322, %v322
          %v324 = vrot.slane %v323, 4
          %v325 = vadd.f32 %v323, %v324
          %v326 = vrot.slane %v325, 2
          %v327 = vadd.f32 %v325, %v326
          %v328 = vrot.slane %v327, 1
          %v329 = vadd.f32 %v327, %v328
          %v330 = vmul.f32 %v329, %v320
          %v331 = vld [vmem:[%s1] sm:$0x1]
          %v332 = vadd.f32 %v330, 1e-05
          %v333 = vrsqrt.pop %v332
          %v334 = vmul.f32 %v322, %v333
          %v336 = vlaneseq
          %v337 = vshrl.u32 %v336, 7
          %v338 = vsub.s32 0, %v337
          %v339 = vrot.slane %v331, %v338
          %v341 = vmul.f32 %v339, %v334
          %v342 = vld [vmem:[#allocation6] sm:$0x1]
          %v344 = vlaneseq
          %v345 = vshrl.u32 %v344, 7
          %v346 = vsub.s32 0, %v345
          %v347 = vrot.slane %v342, %v346
          %v349 = vadd.f32 %v341, %v347
          %350 = vst [vmem:[#allocation2] sm:$0xff] %v349
        $region60: #{tpu_custom_call.1} parent=43 // pred_fallthru
          _
        %v351 = vld [vmem:[#allocation2] sm:$0xff]
        %v352 = vld [vmem:[%s273] sm:$0xff]
        %v353 = vld [vmem:[%s273 + $0x8] sm:$0xff]
        %v354 = vld [vmem:[%s273 + $0x10] sm:$0xff]
        %v355 = vld [vmem:[%s273 + $0x18] sm:$0xff]
        %v356 = vld [vmem:[%s273 + $0x20] sm:$0xff]
        %v357 = vld [vmem:[%s273 + $0x28] sm:$0xff]
        %v358 = vld [vmem:[%s273 + $0x30] sm:$0xff]
        %v359 = vld [vmem:[%s273 + $0x38] sm:$0xff]
        %v360 = vld [vmem:[%s273 + $0x40] sm:$0xff]
        %v361 = vld [vmem:[%s273 + $0x48] sm:$0xff]
        %v362 = vld [vmem:[%s273 + $0x50] sm:$0xff]
        %v363 = vld [vmem:[%s273 + $0x58] sm:$0xff]
        %v364 = vld [vmem:[%s273 + $0x60] sm:$0xff]
        %v365 = vld [vmem:[%s273 + $0x68] sm:$0xff]
        %v366 = vld [vmem:[%s273 + $0x70] sm:$0xff]
        %v367 = vld [vmem:[%s273 + $0x78] sm:$0xff]
        %368 = vmatprep.subr.mxu0 0.0
        %369 = vmatpush1.msra.mxu0 %v352
        %370 = vmatprep.subr.mxu0 0.0
        %371 = vmatpush1.msra.mxu0 %v353
        %372 = vmatprep.subr.mxu0 0.0
        %373 = vmatpush1.msra.mxu0 %v354
        %374 = vmatprep.subr.mxu0 0.0
        %375 = vmatpush1.msra.mxu0 %v355
        %376 = vmatprep.subr.mxu0 0.0
        %377 = vmatpush1.msra.mxu0 %v356
        %378 = vmatprep.subr.mxu0 0.0
        %379 = vmatpush1.msra.mxu0 %v357
        %380 = vmatprep.subr.mxu0 0.0
        %381 = vmatpush1.msra.mxu0 %v358
        %382 = vmatprep.subr.mxu0 0.0
        %383 = vmatpush1.msra.mxu0 %v359
        %384 = vmatprep.subr.mxu0 0.0
        %385 = vmatpush1.msra.mxu0 %v360
        %386 = vmatprep.subr.mxu0 0.0
        %387 = vmatpush1.msra.mxu0 %v361
        %388 = vmatprep.subr.mxu0 0.0
        %389 = vmatpush1.msra.mxu0 %v362
        %390 = vmatprep.subr.mxu0 0.0
        %391 = vmatpush1.msra.mxu0 %v363
        %392 = vmatprep.subr.mxu0 0.0
        %393 = vmatpush1.msra.mxu0 %v364
        %394 = vmatprep.subr.mxu0 0.0
        %395 = vmatpush1.msra.mxu0 %v365
        %396 = vmatprep.subr.mxu0 0.0
        %397 = vmatpush1.msra.mxu0 %v366
        %398 = vmatprep.subr.mxu0 0.0
        %399 = vmatpush1.msra.mxu0 %v367
        %400 = vmatprep.subr.mxu0 0.0
        %401 = vmatpush1.msra.mxu0 0.0
        %402 = vmatprep.subr.mxu0 0.0
        %403 = vmatpush1.msra.mxu0 0.0
        %404 = vmatprep.subr.mxu0 0.0
        %405 = vmatpush1.msra.mxu0 0.0
        %406 = vmatprep.subr.mxu0 0.0
        %407 = vmatpush1.msra.mxu0 0.0
        %408 = vmatprep.subr.mxu0 0.0
        %409 = vmatpush1.msra.mxu0 0.0
        %410 = vmatprep.subr.mxu0 0.0
        %411 = vmatpush1.msra.mxu0 0.0
        %412 = vmatprep.subr.mxu0 0.0
        %413 = vmatpush1.msra.mxu0 0.0
        %414 = vmatprep.subr.mxu0 0.0
        %415 = vmatpush1.msra.mxu0 0.0
        %416 = vmatprep.subr.mxu0 0.0
        %417 = vmatpush1.msra.mxu0 0.0
        %418 = vmatprep.subr.mxu0 0.0
        %419 = vmatpush1.msra.mxu0 0.0
        %420 = vmatprep.subr.mxu0 0.0
        %421 = vmatpush1.msra.mxu0 0.0
        %422 = vmatprep.subr.mxu0 0.0
        %423 = vmatpush1.msra.mxu0 0.0
        %424 = vmatprep.subr.mxu0 0.0
        %425 = vmatpush1.msra.mxu0 0.0
        %426 = vmatprep.subr.mxu0 0.0
        %427 = vmatpush1.msra.mxu0 0.0
        %428 = vmatprep.subr.mxu0 0.0
        %429 = vmatpush1.msra.mxu0 0.0
        %430 = vmatprep.subr.mxu0 0.0
        %431 = vmatpush1.msra.mxu0 0.0
        %432 = vmatprep.mubr.f32.mxu0 0.0
        %433 = vmatmul.mubr.f32.gmra.mrb[0].mxu0 %v351
        %v434 = vpop.f32.mrb[0].mxu0
        %v435 = vadd.f32 0.0, %v434
        %v436 = vpop.f32.mrb[0].mxu0
        %437 = vdwg.mxu0
        %v438 = vrot.slane %v435, 4
        %v439 = vadd.f32 %v435, %v438
        %v440 = vrot.slane %v439, 2
        %v441 = vadd.f32 %v439, %v440
        %v442 = vrot.slane %v441, 1
        %v443 = vadd.f32 %v441, %v442
        %v444 = vrcp.pop 8.0
        %v445 = vmul.f32 %v443, %v444
        %v446 = vsub.f32 %v435, %v445
        %v447 = vmul.f32 %v446, %v446
        %v448 = vrot.slane %v447, 4
        %v449 = vadd.f32 %v447, %v448
        %v450 = vrot.slane %v449, 2
        %v451 = vadd.f32 %v449, %v450
        %v452 = vrot.slane %v451, 1
        %v453 = vadd.f32 %v451, %v452
        %v454 = vmul.f32 %v453, %v444
        %v455 = vld [vmem:[%s305] sm:$0x1]
        %v456 = vadd.f32 %v454, 1e-05
        %v457 = vrsqrt.pop %v456
        %v458 = vmul.f32 %v446, %v457
        %v460 = vlaneseq
        %v461 = vshrl.u32 %v460, 7
        %v462 = vsub.s32 0, %v461
        %v463 = vrot.slane %v455, %v462
        %v465 = vmul.f32 %v463, %v458
        %v466 = vld [vmem:[%s308] sm:$0x1]
        %v468 = vlaneseq
        %v469 = vshrl.u32 %v468, 7
        %v470 = vsub.s32 0, %v469
        %v471 = vrot.slane %v466, %v470
        %v473 = vadd.f32 %v465, %v471
        %vm474 = vcmp.gt.f32.partialorder %v473, 0.0
        %v475 = vmul.f32 %v473, 0.1
        %v476 = vsel %vm474, %v473, %v475
        %477 = vst [vmem:[#allocation2] sm:$0xff] %v476
        %p478 = scmp.eq.s32.totalorder %s20, 2
        // Predicated region
        $region61: #{tpu_custom_call.1} parent=43 // pred_check
          %p479 = pneg %p478
        $region62: #{tpu_custom_call.1} parent=43 // pred_check_branch
          %481 = sbr.rel (%p479) target = $region64
        $region63: #{tpu_custom_call.1} parent=43 // pred_region
          %482 = vst [vmem:[#allocation9] sm:$0xff] %v476
        $region64: #{tpu_custom_call.1} parent=43 // pred_fallthru
          _
        // Predicated region
        $region65: #{tpu_custom_call.1} parent=43 // pred_check
          %p483 = pneg %p174
        $region66: #{tpu_custom_call.1} parent=43 // pred_check_branch
          %485 = sbr.rel (%p483) target = $region68
        $region67: #{tpu_custom_call.1} parent=43 // pred_region
          %s487 = ssub.s32 128, 128
          %488 = vsyncadd [#allocation5], %s487
          %s490 = sshll.u32 [#allocation9], 4
          %s491 = int_to_ptr.vmem [resolvable:$true] %s490
          %493 = dma.vmem_to_hbm [thread:$0]  %s491, 128, %s6, [#allocation5]
        $region68: #{tpu_custom_call.1} parent=43 // pred_fallthru
          _
        // Predicated region
        $region69: #{tpu_custom_call.1} parent=43 // pred_check
          %p494 = pneg %p174
        $region70: #{tpu_custom_call.1} parent=43 // pred_check_branch
          %496 = sbr.rel (%p494) target = $region72
        $region71: #{tpu_custom_call.1} parent=43 // pred_region
          %497 = dma.done [#allocation5], 128
        $region72: #{tpu_custom_call.1} parent=43 // pred_fallthru
          _
      $region44: #{tpu_custom_call.1} parent=5 // pred_fallthru
        _
      %p498 = scmp.le.s32.totalorder 2, %s15
      // Predicated region
      $region73: #{tpu_custom_call.1} parent=5 // pred_check
        %p499 = pneg %p498
      $region74: #{tpu_custom_call.1} parent=5 // pred_check_branch
        %501 = sbr.rel (%p499) target = $region76
      $region75: #{tpu_custom_call.1} parent=5 // pred_region
        %s502 = ssub.s32 %s15, 2
      $region76: #{tpu_custom_call.1} parent=5 // pred_fallthru
        _
    $region6: #{tpu_custom_call.1} parent=1 // loop_footer
      %s19 = sadd.s32 1, %s15
    $region7: #{tpu_custom_call.1} parent=1 // loop_footer_branch
      %14 = sbr.rel target = $region3
    $region8: #{tpu_custom_call.1} parent=1 // loop_exit
      _
    %503 = vsyncpa [#allocation4], 1
    %s504 = scalar_lea.sflag [#allocation4], 1
    %505 = vsyncpa %s504, 1
    %506 = vsyncpa [#allocation7], 1
    %507 = vsyncpa [#allocation5], 1
    %s508 = scalar_lea.sflag [#allocation5], 1
    %509 = vsyncpa %s508, 1

</llo_original>
